<compile_context>
chip_gen: v7x
topology: tpu7x:2x2x1
jax: 0.10.0
libtpu: 0.0.40
codegen_flags: <defaults>
</compile_context>

<pallas_src>
import functools
import math

import jax
import jax.numpy as jnp
from jax.experimental import pallas as pl
from jax.experimental.pallas import tpu as pltpu


def _expand_shuffle_ln_kernel(x_ref, w_ref, sm_ref, sb_ref, g_ref, b_ref,
                              o_ref, *, eps):
    # x_ref : (T, dim)      T = rows_per_step * W token rows
    # w_ref : (1, dim, G)   G = 4*dim, columns (p2, c) of this p1 slab
    # sm_ref: (G, 4)        group-mean projector (1/dim on group diagonal)
    # sb_ref: (4, G)        group -> lanes broadcast indicator
    # g/b   : (1, G)        LayerNorm affine, tiled over p2
    # o_ref : (rh, 1, W, G)
    x = x_ref[...]
    w = w_ref[0]
    y = jnp.dot(x, w, preferred_element_type=jnp.float32)               # (T, G)

    sm = sm_ref[...]
    sb = sb_ref[...]
    # Grouped LayerNorm stats on the MXU (two-pass mean/centered-var, f32).
    mean = jnp.dot(jnp.dot(y, sm, preferred_element_type=jnp.float32),
                   sb, preferred_element_type=jnp.float32)               # (T, G)
    cent = y - mean
    var = jnp.dot(jnp.dot(cent * cent, sm, preferred_element_type=jnp.float32),
                  sb, preferred_element_type=jnp.float32)                # (T, G)
    out = cent * jax.lax.rsqrt(var + eps) * g_ref[...] + b_ref[...]

    rh, _, w_px, g_dim = o_ref.shape
    # (T, G) -> (rh, 1, W, G): leading-dim split only (lane dim unchanged).
    o_ref[...] = out.reshape(rh, 1, w_px, g_dim).astype(o_ref.dtype)


def _choose_rows_per_step(bh, w_px, g_dim):
    # ~2 MiB f32 output block (64..512 token rows per step); keep >= 2 row
    # tiles when possible so the grid has >= 8 steps (pipelining + megacore).
    target_tokens = max(8, min(512, (2 * 1024 * 1024) // max(1, g_dim * 4)))
    rh = max(1, target_tokens // max(1, w_px))
    rh = min(rh, bh)
    if bh >= 2:
        rh = min(rh, max(1, bh // 2))
    align = 8 // math.gcd(w_px, 8)            # (rh * W) must be a multiple of 8
    rh = -(-rh // align) * align
    return rh


def final_patch_expand_x4(x, w_expand, gamma, beta, *, input_resolution,
                          dim_scale=4, rows_per_step=None, out_dtype=None,
                          eps=1e-5):
    """x: (B, H*W, dim) -> (B, (H*4)*(W*4), dim)."""
    H, W = input_resolution
    B, L, dim = x.shape
    assert L == H * W, "input feature has wrong size"
    assert dim_scale == 4, "FinalPatchExpand_X4 uses dim_scale=4 (16x expand)"
    G = 4 * dim                                # lanes per p1 slab: (p2, c)
    out_dtype = out_dtype or x.dtype           # pass jnp.bfloat16 to halve writeback

    BH = B * H
    if rows_per_step is None:
        rh = _choose_rows_per_step(BH, W, G)
    else:
        align = 8 // math.gcd(W, 8)
        rh = -(-rows_per_step // align) * align
    nb = -(-BH // rh)
    BH_pad = nb * rh

    # Tokens grouped by image row; pad image rows up to a multiple of rh
    # (pad rows are zeros, LayerNorm stays finite, they are sliced off below).
    x3 = x.reshape(BH, W, dim)
    if BH_pad != BH:
        x3 = jnp.pad(x3, ((0, BH_pad - BH), (0, 0), (0, 0)))
    x2 = x3.reshape(BH_pad * W, dim).astype(jnp.float32)

    # Expand weight pre-split by p1: (4, dim, 4*dim); slab p1 holds (p2, c).
    w4 = w_expand.astype(jnp.float32).reshape(dim, 4, G).transpose(1, 0, 2)

    # Constant group-indicator matrices for the MXU LayerNorm reductions.
    grp = jnp.arange(G, dtype=jnp.int32) // dim
    gid = jnp.arange(4, dtype=jnp.int32)
    s_mean = (grp[:, None] == gid[None, :]).astype(jnp.float32) / dim    # (G, 4)
    s_bcast = (gid[:, None] == grp[None, :]).astype(jnp.float32)         # (4, G)

    g_t = jnp.tile(gamma.astype(jnp.float32), 4).reshape(1, G)
    b_t = jnp.tile(beta.astype(jnp.float32), 4).reshape(1, G)

    T = rh * W
    out4 = pl.pallas_call(
        functools.partial(_expand_shuffle_ln_kernel, eps=eps),
        out_shape=jax.ShapeDtypeStruct((BH_pad, 4, W, G), out_dtype),
        grid_spec=pltpu.PrefetchScalarGridSpec(
            num_scalar_prefetch=0,
            grid=(nb, 4),                       # (image-row tiles, p1)
            in_specs=[
                pl.BlockSpec((T, dim), lambda i, p: (i, 0)),
                pl.BlockSpec((1, dim, G), lambda i, p: (p, 0, 0)),
                pl.BlockSpec((G, 4), lambda i, p: (0, 0)),
                pl.BlockSpec((4, G), lambda i, p: (0, 0)),
                pl.BlockSpec((1, G), lambda i, p: (0, 0)),
                pl.BlockSpec((1, G), lambda i, p: (0, 0)),
            ],
            out_specs=pl.BlockSpec((rh, 1, W, G), lambda i, p: (i, p, 0, 0)),
        ),
        compiler_params=pltpu.CompilerParams(
            dimension_semantics=("parallel", "arbitrary")),
    )(x2, w4, s_mean, s_bcast, g_t, b_t)

    if BH_pad != BH:
        out4 = out4[:BH]
    # (B*H, 4, W, 4*dim) is already ordered (b, h, p1, w, p2, c): pure reshape.
    return out4.reshape(B, (4 * H) * (4 * W), dim)


def _reference(x, w_expand, gamma, beta, *, input_resolution, dim_scale=4,
               eps=1e-5):
    H, W = input_resolution
    B, L, dim = x.shape
    y = jnp.einsum("blc,cd->bld", x, w_expand)            # (B, L, 16*dim)
    p = dim_scale
    y = y.reshape(B, H, W, p, p, dim).transpose(0, 1, 3, 2, 4, 5)
    y = y.reshape(B, (H * p) * (W * p), dim)
    mu = jnp.mean(y, axis=-1, keepdims=True)
    var = jnp.mean(jnp.square(y - mu), axis=-1, keepdims=True)
    return (y - mu) * jax.lax.rsqrt(var + eps) * gamma + beta


if __name__ == "__main__":
    # Module config: input_resolution=(8, 8), dim=32, dim_scale=4.
    B, H, W, dim = 2, 8, 8, 32
    key = jax.random.PRNGKey(0)
    kx, kw, kg, kb = jax.random.split(key, 4)

    x = jax.random.normal(kx, (B, H * W, dim), dtype=jnp.float32)
    # nn.Linear(dim, 16*dim, bias=False): weight laid out here as (dim, 16*dim)
    w_expand = jax.random.normal(kw, (dim, 16 * dim), dtype=jnp.float32) * 0.05
    gamma = 1.0 + 0.1 * jax.random.normal(kg, (dim,), dtype=jnp.float32)
    beta = 0.1 * jax.random.normal(kb, (dim,), dtype=jnp.float32)

    out = final_patch_expand_x4(x, w_expand, gamma, beta,
                                input_resolution=(H, W), dim_scale=4)
    out = jax.block_until_ready(out)

    ref = _reference(x, w_expand, gamma, beta, input_resolution=(H, W),
                     dim_scale=4)
    assert out.shape == (B, (H * 4) * (W * 4), dim), out.shape
    assert jnp.allclose(out, ref, atol=1e-4, rtol=1e-4), "mismatch vs reference"

    print("KERNEL_OK")
</pallas_src>

<mosaic_0001>
module attributes {stable_mosaic.version = 11 : i64} {
  func.func @_expand_shuffle_ln_kernel(%arg0: i32, %arg1: i32, %arg2: memref<64x32xf32, #tpu.memory_space<vmem>>, %arg3: memref<1x32x128xf32, #tpu.memory_space<vmem>>, %arg4: memref<128x4xf32, #tpu.memory_space<vmem>>, %arg5: memref<4x128xf32, #tpu.memory_space<vmem>>, %arg6: memref<1x128xf32, #tpu.memory_space<vmem>>, %arg7: memref<1x128xf32, #tpu.memory_space<vmem>>, %arg8: memref<8x1x8x128xf32, #tpu.memory_space<vmem>>) attributes {dimension_semantics = [#tpu.dimension_semantics<parallel>, #tpu.dimension_semantics<arbitrary>], iteration_bounds = array<i64: 2, 4>, scalar_prefetch = 0 : i64, scratch_operands = 0 : i64, tpu.core_type = #tpu.core_type<tc>, window_params = [{transform_indices = @transform_0, window_bounds = array<i64: 64, 32>}, {transform_indices = @transform_1, window_bounds = array<i64: 1, 32, 128>}, {pipeline_mode = #tpu.pipeline_mode<synchronous>, transform_indices = @transform_2, window_bounds = array<i64: 128, 4>}, {pipeline_mode = #tpu.pipeline_mode<synchronous>, transform_indices = @transform_3, window_bounds = array<i64: 4, 128>}, {pipeline_mode = #tpu.pipeline_mode<synchronous>, transform_indices = @transform_4, window_bounds = array<i64: 1, 128>}, {pipeline_mode = #tpu.pipeline_mode<synchronous>, transform_indices = @transform_5, window_bounds = array<i64: 1, 128>}, {transform_indices = @transform_6, window_bounds = array<i64: 8, 1, 8, 128>}]} {
    %c0 = arith.constant 0 : index
    %c0_0 = arith.constant 0 : index
    %0 = vector.load %arg2[%c0, %c0_0] : memref<64x32xf32, #tpu.memory_space<vmem>>, vector<64x32xf32>
    %c0_1 = arith.constant 0 : index
    %c0_2 = arith.constant 0 : index
    %c0_3 = arith.constant 0 : index
    %1 = vector.load %arg3[%c0_1, %c0_2, %c0_3] : memref<1x32x128xf32, #tpu.memory_space<vmem>>, vector<1x32x128xf32>
    %2 = vector.shape_cast %1 : vector<1x32x128xf32> to vector<32x128xf32>
    %cst = arith.constant dense<0.000000e+00> : vector<64x128xf32>
    %3 = tpu.matmul %0, %2, %cst {dimension_numbers = #tpu.dot_dimension_numbers<[1], [0], [0], [1], [0, 0, 1, 1], [], []>} : vector<64x32xf32>, vector<32x128xf32>, vector<64x128xf32> -> vector<64x128xf32>
    %c0_4 = arith.constant 0 : index
    %c0_5 = arith.constant 0 : index
    %4 = vector.load %arg4[%c0_4, %c0_5] : memref<128x4xf32, #tpu.memory_space<vmem>>, vector<128x4xf32>
    %c0_6 = arith.constant 0 : index
    %c0_7 = arith.constant 0 : index
    %5 = vector.load %arg5[%c0_6, %c0_7] : memref<4x128xf32, #tpu.memory_space<vmem>>, vector<4x128xf32>
    %cst_8 = arith.constant dense<0.000000e+00> : vector<64x4xf32>
    %6 = tpu.matmul %3, %4, %cst_8 {dimension_numbers = #tpu.dot_dimension_numbers<[1], [0], [0], [1], [0, 0, 1, 1], [], []>} : vector<64x128xf32>, vector<128x4xf32>, vector<64x4xf32> -> vector<64x4xf32>
    %cst_9 = arith.constant dense<0.000000e+00> : vector<64x128xf32>
    %7 = tpu.matmul %6, %5, %cst_9 {dimension_numbers = #tpu.dot_dimension_numbers<[1], [0], [0], [1], [0, 0, 1, 1], [], []>} : vector<64x4xf32>, vector<4x128xf32>, vector<64x128xf32> -> vector<64x128xf32>
    %8 = arith.subf %3, %7 : vector<64x128xf32>
    %9 = arith.mulf %8, %8 : vector<64x128xf32>
    %cst_10 = arith.constant dense<0.000000e+00> : vector<64x4xf32>
    %10 = tpu.matmul %9, %4, %cst_10 {dimension_numbers = #tpu.dot_dimension_numbers<[1], [0], [0], [1], [0, 0, 1, 1], [], []>} : vector<64x128xf32>, vector<128x4xf32>, vector<64x4xf32> -> vector<64x4xf32>
    %cst_11 = arith.constant dense<0.000000e+00> : vector<64x128xf32>
    %11 = tpu.matmul %10, %5, %cst_11 {dimension_numbers = #tpu.dot_dimension_numbers<[1], [0], [0], [1], [0, 0, 1, 1], [], []>} : vector<64x4xf32>, vector<4x128xf32>, vector<64x128xf32> -> vector<64x128xf32>
    %cst_12 = arith.constant 9.99999974E-6 : f32
    %12 = vector.broadcast %cst_12 : f32 to vector<64x128xf32>
    %13 = arith.addf %11, %12 : vector<64x128xf32>
    %14 = math.rsqrt %13 : vector<64x128xf32>
    %15 = arith.mulf %8, %14 : vector<64x128xf32>
    %c0_13 = arith.constant 0 : index
    %c0_14 = arith.constant 0 : index
    %16 = vector.load %arg6[%c0_13, %c0_14] : memref<1x128xf32, #tpu.memory_space<vmem>>, vector<1x128xf32>
    %17 = vector.broadcast %16 : vector<1x128xf32> to vector<64x128xf32>
    %18 = arith.mulf %15, %17 : vector<64x128xf32>
    %c0_15 = arith.constant 0 : index
    %c0_16 = arith.constant 0 : index
    %19 = vector.load %arg7[%c0_15, %c0_16] : memref<1x128xf32, #tpu.memory_space<vmem>>, vector<1x128xf32>
    %20 = vector.broadcast %19 : vector<1x128xf32> to vector<64x128xf32>
    %21 = arith.addf %18, %20 : vector<64x128xf32>
    %22 = vector.shape_cast %21 : vector<64x128xf32> to vector<8x1x8x128xf32>
    %c0_17 = arith.constant 0 : index
    %c0_18 = arith.constant 0 : index
    %c0_19 = arith.constant 0 : index
    %c0_20 = arith.constant 0 : index
    %23 = vector.load %arg8[%c0_17, %c0_18, %c0_19, %c0_20] : memref<8x1x8x128xf32, #tpu.memory_space<vmem>>, vector<8x1x8x128xf32>
    tpu.vector_store %arg8[%c0_17, %c0_18, %c0_19, %c0_20], %22 {strides = array<i32>} : memref<8x1x8x128xf32, #tpu.memory_space<vmem>>, vector<8x1x8x128xf32>,
    return
  }
  func.func @transform_0(%arg0: i32, %arg1: i32) -> (i32, i32) {
    %c0_i32 = arith.constant 0 : i32
    %c0_i32_0 = arith.constant 0 : i32
    return %arg0, %c0_i32 : i32, i32
  }
  func.func @transform_1(%arg0: i32, %arg1: i32) -> (i32, i32, i32) {
    %c0_i32 = arith.constant 0 : i32
    %c0_i32_0 = arith.constant 0 : i32
    %c0_i32_1 = arith.constant 0 : i32
    return %arg1, %c0_i32, %c0_i32_0 : i32, i32, i32
  }
  func.func @transform_2(%arg0: i32, %arg1: i32) -> (i32, i32) {
    %c0_i32 = arith.constant 0 : i32
    %c0_i32_0 = arith.constant 0 : i32
    %c0_i32_1 = arith.constant 0 : i32
    return %c0_i32, %c0_i32_0 : i32, i32
  }
  func.func @transform_3(%arg0: i32, %arg1: i32) -> (i32, i32) {
    %c0_i32 = arith.constant 0 : i32
    %c0_i32_0 = arith.constant 0 : i32
    %c0_i32_1 = arith.constant 0 : i32
    return %c0_i32, %c0_i32_0 : i32, i32
  }
  func.func @transform_4(%arg0: i32, %arg1: i32) -> (i32, i32) {
    %c0_i32 = arith.constant 0 : i32
    %c0_i32_0 = arith.constant 0 : i32
    %c0_i32_1 = arith.constant 0 : i32
    return %c0_i32, %c0_i32_0 : i32, i32
  }
  func.func @transform_5(%arg0: i32, %arg1: i32) -> (i32, i32) {
    %c0_i32 = arith.constant 0 : i32
    %c0_i32_0 = arith.constant 0 : i32
    %c0_i32_1 = arith.constant 0 : i32
    return %c0_i32, %c0_i32_0 : i32, i32
  }
  func.func @transform_6(%arg0: i32, %arg1: i32) -> (i32, i32, i32, i32) {
    %c0_i32 = arith.constant 0 : i32
    %c0_i32_0 = arith.constant 0 : i32
    %c0_i32_1 = arith.constant 0 : i32
    return %arg0, %arg1, %c0_i32, %c0_i32_0 : i32, i32, i32, i32
  }
}

</mosaic_0001>

<llo_original>
// kernel: tpu_custom_call.1
$region0: #{tpu_custom_call.1}
  #allocation0 [shape = 'u32[]', space=smem, size = 0x4, offset = 0x4, fixed_abs, tag = 'smem constant byte address 0x4 - core index']
  #allocation1 [shape = 'u32[144,128]{1,0:T(1,128)}', space=vmem, size = 0x12000, scoped, tag = 'internal scratch']
  %s0 = inlined_call_operand.vmem [shape: f32[128,32], index: 0, kind: input, shape index: {}]
  %s1 = inlined_call_operand.vmem [shape: f32[4,32,128], index: 1, kind: input, shape index: {}]
  %s2 = inlined_call_operand.vmem [shape: f32[128,4], index: 2, kind: input, shape index: {}]
  %s3 = inlined_call_operand.vmem [shape: f32[4,128], index: 3, kind: input, shape index: {}]
  %s4 = inlined_call_operand.vmem [shape: f32[1,128], index: 4, kind: input, shape index: {}]
  %s5 = inlined_call_operand.vmem [shape: f32[1,128], index: 5, kind: input, shape index: {}]
  %s6 = inlined_call_operand.hbm [shape: f32[16,4,8,128], index: 6, kind: output, shape index: {}]
  %s7 = sld [smem:[#allocation0]]
  $region57: #{tpu_custom_call.1} parent=0
    _
  %s9 = ssub.s32 1, %s7
  %s10 = scalar_select 0, %s9, %s7
  $region1: #{tpu_custom_call.1} parent=0
    #allocation2 [shape = 'u8[65536]{0}', space=vmem, size = 0x10000, scoped, tag = 'output window, operand 0']
    #allocation3 [shape = 's32[2]{0}', space=sflag, size = 0x8, scoped, tag = 'scoped memory for tpu_custom_call.1']
    %11 = vsyncpa [#allocation3], 0
    %s12 = scalar_lea.sflag [#allocation3], 1
    %13 = vsyncpa %s12, 0
    loop: start=0, step=1, limit=10
    $region2: #{tpu_custom_call.1} parent=1 // loop_pre_header
      _
    $region3: #{tpu_custom_call.1} parent=1 // loop_header
      %s15 = sphi 0, %s19
      %p16 = scmp.ge.s32.totalorder %s15, 10
      %s22 = sphi 0, %s34
      %s23 = sphi 0, %s30
      %s24 = sphi 0, %s22
      %s25 = sphi 0, %s23
      %s26 = sphi 0, %s24
      %s27 = sphi 0, %s25
      %s37 = sphi 0, %s39
      %s40 = sphi 0, %s37
      %s41 = sphi 0, %s40
      %s57 = sphi 0, %s41
      %s63 = sphi 0, %s65
      %s66 = sphi 0, %s63
      %s67 = sphi 0, %s66
      %s83 = sphi 0, %s67
      %s87 = sphi 0, %s87
      %s89 = sphi 0, %s87
      %s90 = sphi 0, %s89
      %s104 = sphi 0, %s90
      %s108 = sphi 0, %s108
      %s110 = sphi 0, %s108
      %s111 = sphi 0, %s110
      %s125 = sphi 0, %s111
      %s129 = sphi 0, %s129
      %s131 = sphi 0, %s129
      %s132 = sphi 0, %s131
      %s146 = sphi 0, %s132
      %s150 = sphi 0, %s150
      %s152 = sphi 0, %s150
      %s153 = sphi 0, %s152
      %s167 = sphi 0, %s153
      %s175 = sphi 0, %s177
      %s178 = sphi 0, %s175
      %s179 = sphi 0, %s178
      %s195 = sphi 0, %s179
    $region4: #{tpu_custom_call.1} parent=1 // loop_header_branch
      %18 = sbr.rel (%p16) target = $region8
    $region5: #{tpu_custom_call.1} parent=1 // loop_body
      %s20 = ssub.s32 %s15, 1
      %s21 = ssub.s32 %s15, 2
      %s28 = sadd.s32 1, %s23
      %p29 = scmp.ge.s32.totalorder %s28, 4
      %s30 = scalar_select %p29, 0, %s28
      %s31 = sadd.s32 1, %s22
      %s32 = scalar_select %p29, %s31, %s22
      %p33 = scmp.ge.s32.totalorder %s32, 2
      %s34 = scalar_select %p33, 0, %s32
      %s35 = ssub.s32 %s22, %s34
      %p36 = scmp.eq.s32.totalorder %s35, 0
      %s38 = sadd.s32 %s37, 1
      %s39 = scalar_select %p36, %s37, %s38
      %p42 = pneg %p36
      %p43 = scmp.eq.s32.totalorder %s15, 7
      %p44 = por %p42, %p43
      %p45 = scmp.ne.s32.totalorder %s37, %s40
      %p46 = scmp.eq.s32.totalorder %s15, 0
      %p47 = por %p45, %p46
      %p48 = scmp.ne.s32.totalorder %s37, %s40
      %p49 = scmp.eq.s32.totalorder %s20, 7
      %p50 = por %p48, %p49
      %p51 = scmp.ne.s32.totalorder %s40, %s41
      %p52 = scmp.eq.s32.totalorder %s20, 0
      %p53 = por %p51, %p52
      %p54 = scmp.ne.s32.totalorder %s40, %s41
      %p55 = scmp.eq.s32.totalorder %s21, 7
      %p56 = por %p54, %p55
      %p58 = scmp.ne.s32.totalorder %s41, %s57
      %p59 = scmp.eq.s32.totalorder %s21, 0
      %p60 = por %p58, %p59
      %s61 = ssub.s32 %s23, %s30
      %p62 = scmp.eq.s32.totalorder %s61, 0
      %s64 = sadd.s32 %s63, 1
      %s65 = scalar_select %p62, %s63, %s64
      %p68 = pneg %p62
      %p69 = scmp.eq.s32.totalorder %s15, 7
      %p70 = por %p68, %p69
      %p71 = scmp.ne.s32.totalorder %s63, %s66
      %p72 = scmp.eq.s32.totalorder %s15, 0
      %p73 = por %p71, %p72
      %p74 = scmp.ne.s32.totalorder %s63, %s66
      %p75 = scmp.eq.s32.totalorder %s20, 7
      %p76 = por %p74, %p75
      %p77 = scmp.ne.s32.totalorder %s66, %s67
      %p78 = scmp.eq.s32.totalorder %s20, 0
      %p79 = por %p77, %p78
      %p80 = scmp.ne.s32.totalorder %s66, %s67
      %p81 = scmp.eq.s32.totalorder %s21, 7
      %p82 = por %p80, %p81
      %p84 = scmp.ne.s32.totalorder %s67, %s83
      %p85 = scmp.eq.s32.totalorder %s21, 0
      %p86 = por %p84, %p85
      %s88 = sadd.s32 %s87, 1
      %p91 = scmp.eq.s32.totalorder %s15, 7
      %p92 = scmp.ne.s32.totalorder %s87, %s89
      %p93 = scmp.eq.s32.totalorder %s15, 0
      %p94 = por %p92, %p93
      %p95 = scmp.ne.s32.totalorder %s87, %s89
      %p96 = scmp.eq.s32.totalorder %s20, 7
      %p97 = por %p95, %p96
      %p98 = scmp.ne.s32.totalorder %s89, %s90
      %p99 = scmp.eq.s32.totalorder %s20, 0
      %p100 = por %p98, %p99
      %p101 = scmp.ne.s32.totalorder %s89, %s90
      %p102 = scmp.eq.s32.totalorder %s21, 7
      %p103 = por %p101, %p102
      %p105 = scmp.ne.s32.totalorder %s90, %s104
      %p106 = scmp.eq.s32.totalorder %s21, 0
      %p107 = por %p105, %p106
      %s109 = sadd.s32 %s108, 1
      %p112 = scmp.eq.s32.totalorder %s15, 7
      %p113 = scmp.ne.s32.totalorder %s108, %s110
      %p114 = scmp.eq.s32.totalorder %s15, 0
      %p115 = por %p113, %p114
      %p116 = scmp.ne.s32.totalorder %s108, %s110
      %p117 = scmp.eq.s32.totalorder %s20, 7
      %p118 = por %p116, %p117
      %p119 = scmp.ne.s32.totalorder %s110, %s111
      %p120 = scmp.eq.s32.totalorder %s20, 0
      %p121 = por %p119, %p120
      %p122 = scmp.ne.s32.totalorder %s110, %s111
      %p123 = scmp.eq.s32.totalorder %s21, 7
      %p124 = por %p122, %p123
      %p126 = scmp.ne.s32.totalorder %s111, %s125
      %p127 = scmp.eq.s32.totalorder %s21, 0
      %p128 = por %p126, %p127
      %s130 = sadd.s32 %s129, 1
      %p133 = scmp.eq.s32.totalorder %s15, 7
      %p134 = scmp.ne.s32.totalorder %s129, %s131
      %p135 = scmp.eq.s32.totalorder %s15, 0
      %p136 = por %p134, %p135
      %p137 = scmp.ne.s32.totalorder %s129, %s131
      %p138 = scmp.eq.s32.totalorder %s20, 7
      %p139 = por %p137, %p138
      %p140 = scmp.ne.s32.totalorder %s131, %s132
      %p141 = scmp.eq.s32.totalorder %s20, 0
      %p142 = por %p140, %p141
      %p143 = scmp.ne.s32.totalorder %s131, %s132
      %p144 = scmp.eq.s32.totalorder %s21, 7
      %p145 = por %p143, %p144
      %p147 = scmp.ne.s32.totalorder %s132, %s146
      %p148 = scmp.eq.s32.totalorder %s21, 0
      %p149 = por %p147, %p148
      %s151 = sadd.s32 %s150, 1
      %p154 = scmp.eq.s32.totalorder %s15, 7
      %p155 = scmp.ne.s32.totalorder %s150, %s152
      %p156 = scmp.eq.s32.totalorder %s15, 0
      %p157 = por %p155, %p156
      %p158 = scmp.ne.s32.totalorder %s150, %s152
      %p159 = scmp.eq.s32.totalorder %s20, 7
      %p160 = por %p158, %p159
      %p161 = scmp.ne.s32.totalorder %s152, %s153
      %p162 = scmp.eq.s32.totalorder %s20, 0
      %p163 = por %p161, %p162
      %p164 = scmp.ne.s32.totalorder %s152, %s153
      %p165 = scmp.eq.s32.totalorder %s21, 7
      %p166 = por %p164, %p165
      %p168 = scmp.ne.s32.totalorder %s153, %s167
      %p169 = scmp.eq.s32.totalorder %s21, 0
      %p170 = por %p168, %p169
      %s171 = ssub.s32 %s22, %s34
      %s172 = ssub.s32 %s23, %s30
      %s173 = sor.u32 %s171, %s172
      %p174 = scmp.eq.s32.totalorder %s173, 0
      %s176 = sadd.s32 %s175, 1
      %s177 = scalar_select %p174, %s175, %s176
      %p180 = pneg %p174
      %p181 = scmp.eq.s32.totalorder %s15, 7
      %p182 = por %p180, %p181
      %p183 = scmp.ne.s32.totalorder %s175, %s178
      %p184 = scmp.eq.s32.totalorder %s15, 0
      %p185 = por %p183, %p184
      %p186 = scmp.ne.s32.totalorder %s175, %s178
      %p187 = scmp.eq.s32.totalorder %s20, 7
      %p188 = por %p186, %p187
      %p189 = scmp.ne.s32.totalorder %s178, %s179
      %p190 = scmp.eq.s32.totalorder %s20, 0
      %p191 = por %p189, %p190
      %p192 = scmp.ne.s32.totalorder %s178, %s179
      %p193 = scmp.eq.s32.totalorder %s21, 7
      %p194 = por %p192, %p193
      %p196 = scmp.ne.s32.totalorder %s179, %s195
      %p197 = scmp.eq.s32.totalorder %s21, 0
      %p198 = por %p196, %p197
      %p199 = scmp.le.s32.totalorder 1, %s15
      %p200 = scmp.lt.s32.totalorder %s15, 9
      %p201 = pnand %p199, %p200
      %p202 = pneg %p201
      // Predicated region
      $region9: #{tpu_custom_call.1} parent=5 // pred_check
        _
      $region10: #{tpu_custom_call.1} parent=5 // pred_check_branch
        %204 = sbr.rel (%p201) target = $region12
      $region11: #{tpu_custom_call.1} parent=5 // pred_region
        %s205 = ssub.s32 %s15, 1
        // Predicated region
        $region13: #{tpu_custom_call.1} parent=11 // pred_check
          %p206 = pneg %p100
        $region14: #{tpu_custom_call.1} parent=11 // pred_check_branch
          %208 = sbr.rel (%p206) target = $region16
        $region15: #{tpu_custom_call.1} parent=11 // pred_region
          _
        $region16: #{tpu_custom_call.1} parent=11 // pred_fallthru
          _
        // Predicated region
        $region17: #{tpu_custom_call.1} parent=11 // pred_check
          %p209 = pneg %p121
        $region18: #{tpu_custom_call.1} parent=11 // pred_check_branch
          %211 = sbr.rel (%p209) target = $region20
        $region19: #{tpu_custom_call.1} parent=11 // pred_region
          _
        $region20: #{tpu_custom_call.1} parent=11 // pred_fallthru
          _
        // Predicated region
        $region21: #{tpu_custom_call.1} parent=11 // pred_check
          %p212 = pneg %p142
        $region22: #{tpu_custom_call.1} parent=11 // pred_check_branch
          %214 = sbr.rel (%p212) target = $region24
        $region23: #{tpu_custom_call.1} parent=11 // pred_region
          _
        $region24: #{tpu_custom_call.1} parent=11 // pred_fallthru
          _
        // Predicated region
        $region25: #{tpu_custom_call.1} parent=11 // pred_check
          %p215 = pneg %p163
        $region26: #{tpu_custom_call.1} parent=11 // pred_check_branch
          %217 = sbr.rel (%p215) target = $region28
        $region27: #{tpu_custom_call.1} parent=11 // pred_region
          _
        $region28: #{tpu_custom_call.1} parent=11 // pred_fallthru
          _
      $region12: #{tpu_custom_call.1} parent=5 // pred_fallthru
        _
      %p218 = scmp.lt.s32.totalorder %s15, 8
      // Predicated region
      $region29: #{tpu_custom_call.1} parent=5 // pred_check
        %p219 = pneg %p218
      $region30: #{tpu_custom_call.1} parent=5 // pred_check_branch
        %221 = sbr.rel (%p219) target = $region32
      $region31: #{tpu_custom_call.1} parent=5 // pred_region
        // Predicated region
        $region33: #{tpu_custom_call.1} parent=31 // pred_check
          %p222 = pneg %p47
        $region34: #{tpu_custom_call.1} parent=31 // pred_check_branch
          %224 = sbr.rel (%p222) target = $region36
        $region35: #{tpu_custom_call.1} parent=31 // pred_region
          %s225 = smul.u32 8, %s22
          %p226 = scmp.lt.s32.totalorder %s225, 15
          %s227 = scalar_select %p226, %s225, 15
          %s228 = smul.addr %s227, 8
          %s229 = scalar_lea.vmem %s0, %s228
          %s230 = smul.u32 8, %s22
        $region36: #{tpu_custom_call.1} parent=31 // pred_fallthru
          _
        // Predicated region
        $region37: #{tpu_custom_call.1} parent=31 // pred_check
          %p231 = pneg %p73
        $region38: #{tpu_custom_call.1} parent=31 // pred_check_branch
          %233 = sbr.rel (%p231) target = $region40
        $region39: #{tpu_custom_call.1} parent=31 // pred_region
          %p234 = scmp.lt.s32.totalorder %s23, 3
          %s235 = scalar_select %p234, %s23, 3
          %s236 = smul.addr %s235, 4
          %s237 = smul.addr %s236, 8
          %s238 = scalar_lea.vmem %s1, %s237
        $region40: #{tpu_custom_call.1} parent=31 // pred_fallthru
          _
      $region32: #{tpu_custom_call.1} parent=5 // pred_fallthru
        _
      %p239 = scmp.le.s32.totalorder 1, %s15
      %p240 = scmp.lt.s32.totalorder %s15, 9
      %p241 = pnand %p239, %p240
      %p242 = pneg %p241
      // Predicated region
      $region41: #{tpu_custom_call.1} parent=5 // pred_check
        _
      $region42: #{tpu_custom_call.1} parent=5 // pred_check_branch
        %244 = sbr.rel (%p241) target = $region44
      $region43: #{tpu_custom_call.1} parent=5 // pred_region
        %s245 = ssub.s32 %s15, 1
        %s246 = smul.u32 8, %s24
        %p247 = scmp.lt.s32.totalorder %s246, 15
        %s248 = scalar_select %p247, %s246, 15
        %s249 = smul.addr %s248, 8
        %s250 = scalar_lea.vmem %s0, %s249
        %p251 = pneg %p53
        %p252 = pneg %p50
        %p253 = scmp.lt.s32.totalorder %s25, 3
        %s254 = scalar_select %p253, %s25, 3
        %s255 = smul.addr %s254, 4
        %s256 = smul.addr %s255, 8
        %s257 = scalar_lea.vmem %s1, %s256
        %p258 = pneg %p79
        %p259 = pneg %p76
        %p260 = pneg %p100
        %p261 = pneg %p97
        %p262 = pneg %p121
        %p263 = pneg %p118
        %p264 = pneg %p142
        %p265 = pneg %p139
        %p266 = pneg %p163
        %p267 = pneg %p160
        %p268 = pneg %p191
        %p269 = pneg %p188
        %s270 = sand.u32 %s178, 1
        %s271 = scalar_lea.sflag [#allocation3], %s270
        %s272 = sand.u32 %s178, 1
        %s273 = smul.addr %s272, 64
        %s274 = scalar_lea.vmem [#allocation2], %s273
        %s275 = smul.u32 8, %s24
        %p276 = scmp.lt.s32.totalorder %s275, 15
        %s277 = scalar_select %p276, %s275, 15
        %s278 = smul.addr %s277, 8
        %s279 = scalar_lea.vmem %s0, %s278
        %s280 = smul.u32 8, %s24
        %p281 = scmp.lt.s32.totalorder %s25, 3
        %s282 = scalar_select %p281, %s25, 3
        %s283 = smul.addr %s282, 4
        %s284 = smul.addr %s283, 8
        %s285 = scalar_lea.vmem %s1, %s284
        %s286 = smul.u32 8, %s24
        %v287 = vld [vmem:[%s279] sm:$0xff]
        %v288 = vld [vmem:[%s279 + $0x8] sm:$0xff]
        %v289 = vld [vmem:[%s279 + $0x10] sm:$0xff]
        %v290 = vld [vmem:[%s279 + $0x18] sm:$0xff]
        %v291 = vld [vmem:[%s279 + $0x20] sm:$0xff]
        %v292 = vld [vmem:[%s279 + $0x28] sm:$0xff]
        %v293 = vld [vmem:[%s279 + $0x30] sm:$0xff]
        %v294 = vld [vmem:[%s279 + $0x38] sm:$0xff]
        %v295 = vld [vmem:[%s285] sm:$0xff]
        %v296 = vld [vmem:[%s285 + $0x8] sm:$0xff]
        %v297 = vld [vmem:[%s285 + $0x10] sm:$0xff]
        %v298 = vld [vmem:[%s285 + $0x18] sm:$0xff]
        %vm299 = vcmask 261120
        %v301 = vsel %vm299, %v287, 0
        %v304 = vsel %vm299, %v288, 0
        %v307 = vsel %vm299, %v289, 0
        %v310 = vsel %vm299, %v290, 0
        %v313 = vsel %vm299, %v291, 0
        %v316 = vsel %vm299, %v292, 0
        %v319 = vsel %vm299, %v293, 0
        %v322 = vsel %vm299, %v294, 0
        %324 = vmatprep.subr.mxu0 0.0
        %325 = vmatpush1.msra.mxu0 %v295
        %326 = vmatprep.subr.mxu0 0.0
        %327 = vmatpush1.msra.mxu0 %v296
        %328 = vmatprep.subr.mxu0 0.0
        %329 = vmatpush1.msra.mxu0 %v297
        %330 = vmatprep.subr.mxu0 0.0
        %331 = vmatpush1.msra.mxu0 %v298
        %332 = vmatprep.subr.mxu0 0.0
        %333 = vmatpush1.msra.mxu0 0.0
        %334 = vmatprep.subr.mxu0 0.0
        %335 = vmatpush1.msra.mxu0 0.0
        %336 = vmatprep.subr.mxu0 0.0
        %337 = vmatpush1.msra.mxu0 0.0
        %338 = vmatprep.subr.mxu0 0.0
        %339 = vmatpush1.msra.mxu0 0.0
        %340 = vmatprep.subr.mxu0 0.0
        %341 = vmatpush1.msra.mxu0 0.0
        %342 = vmatprep.subr.mxu0 0.0
        %343 = vmatpush1.msra.mxu0 0.0
        %344 = vmatprep.subr.mxu0 0.0
        %345 = vmatpush1.msra.mxu0 0.0
        %346 = vmatprep.subr.mxu0 0.0
        %347 = vmatpush1.msra.mxu0 0.0
        %348 = vmatprep.subr.mxu0 0.0
        %349 = vmatpush1.msra.mxu0 0.0
        %350 = vmatprep.subr.mxu0 0.0
        %351 = vmatpush1.msra.mxu0 0.0
        %352 = vmatprep.subr.mxu0 0.0
        %353 = vmatpush1.msra.mxu0 0.0
        %354 = vmatprep.subr.mxu0 0.0
        %355 = vmatpush1.msra.mxu0 0.0
        %356 = vmatprep.subr.mxu0 0.0
        %357 = vmatpush1.msra.mxu0 0.0
        %358 = vmatprep.subr.mxu0 0.0
        %359 = vmatpush1.msra.mxu0 0.0
        %360 = vmatprep.subr.mxu0 0.0
        %361 = vmatpush1.msra.mxu0 0.0
        %362 = vmatprep.subr.mxu0 0.0
        %363 = vmatpush1.msra.mxu0 0.0
        %364 = vmatprep.subr.mxu0 0.0
        %365 = vmatpush1.msra.mxu0 0.0
        %366 = vmatprep.subr.mxu0 0.0
        %367 = vmatpush1.msra.mxu0 0.0
        %368 = vmatprep.subr.mxu0 0.0
        %369 = vmatpush1.msra.mxu0 0.0
        %370 = vmatprep.subr.mxu0 0.0
        %371 = vmatpush1.msra.mxu0 0.0
        %372 = vmatprep.subr.mxu0 0.0
        %373 = vmatpush1.msra.mxu0 0.0
        %374 = vmatprep.subr.mxu0 0.0
        %375 = vmatpush1.msra.mxu0 0.0
        %376 = vmatprep.subr.mxu0 0.0
        %377 = vmatpush1.msra.mxu0 0.0
        %378 = vmatprep.subr.mxu0 0.0
        %379 = vmatpush1.msra.mxu0 0.0
        %380 = vmatprep.subr.mxu0 0.0
        %381 = vmatpush1.msra.mxu0 0.0
        %382 = vmatprep.subr.mxu0 0.0
        %383 = vmatpush1.msra.mxu0 0.0
        %384 = vmatprep.subr.mxu0 0.0
        %385 = vmatpush1.msra.mxu0 0.0
        %386 = vmatprep.subr.mxu0 0.0
        %387 = vmatpush1.msra.mxu0 0.0
        %388 = vmatprep.mubr.f32.mxu0 0.0
        %389 = vmatmul.mubr.f32.gmra.mrb[0].mxu0 %v301
        %v390 = vpop.f32.mrb[0].mxu0
        %v391 = vadd.f32 0.0, %v390
        %v392 = vpop.f32.mrb[0].mxu0
        %393 = vmatprep.mubr.f32.mxu0 0.0
        %394 = vmatmul.mubr.f32.gmra.mrb[0].mxu0 %v304
        %v395 = vpop.f32.mrb[0].mxu0
        %v396 = vadd.f32 0.0, %v395
        %v397 = vpop.f32.mrb[0].mxu0
        %398 = vmatprep.mubr.f32.mxu0 0.0
        %399 = vmatmul.mubr.f32.gmra.mrb[0].mxu0 %v307
        %v400 = vpop.f32.mrb[0].mxu0
        %v401 = vadd.f32 0.0, %v400
        %v402 = vpop.f32.mrb[0].mxu0
        %403 = vmatprep.mubr.f32.mxu0 0.0
        %404 = vmatmul.mubr.f32.gmra.mrb[0].mxu0 %v310
        %v405 = vpop.f32.mrb[0].mxu0
        %v406 = vadd.f32 0.0, %v405
        %v407 = vpop.f32.mrb[0].mxu0
        %408 = vmatprep.mubr.f32.mxu0 0.0
        %409 = vmatmul.mubr.f32.gmra.mrb[0].mxu0 %v313
        %v410 = vpop.f32.mrb[0].mxu0
        %v411 = vadd.f32 0.0, %v410
        %v412 = vpop.f32.mrb[0].mxu0
        %413 = vmatprep.mubr.f32.mxu0 0.0
        %414 = vmatmul.mubr.f32.gmra.mrb[0].mxu0 %v316
        %v415 = vpop.f32.mrb[0].mxu0
        %v416 = vadd.f32 0.0, %v415
        %v417 = vpop.f32.mrb[0].mxu0
        %418 = vmatprep.mubr.f32.mxu0 0.0
        %419 = vmatmul.mubr.f32.gmra.mrb[0].mxu0 %v319
        %v420 = vpop.f32.mrb[0].mxu0
        %v421 = vadd.f32 0.0, %v420
        %v422 = vpop.f32.mrb[0].mxu0
        %423 = vmatprep.mubr.f32.mxu0 0.0
        %424 = vmatmul.mubr.f32.gmra.mrb[0].mxu0 %v322
        %v425 = vpop.f32.mrb[0].mxu0
        %v426 = vadd.f32 0.0, %v425
        %v427 = vpop.f32.mrb[0].mxu0
        %428 = vdwg.mxu0
        %v429 = vld [vmem:[%s2] sm:$0xff]
        %v430 = vld [vmem:[%s2 + $0x8] sm:$0xff]
        %v431 = vld [vmem:[%s2 + $0x10] sm:$0xff]
        %v432 = vld [vmem:[%s2 + $0x18] sm:$0xff]
        %v433 = vld [vmem:[%s2 + $0x20] sm:$0xff]
        %v434 = vld [vmem:[%s2 + $0x28] sm:$0xff]
        %v435 = vld [vmem:[%s2 + $0x30] sm:$0xff]
        %v436 = vld [vmem:[%s2 + $0x38] sm:$0xff]
        %v437 = vld [vmem:[%s2 + $0x40] sm:$0xff]
        %v438 = vld [vmem:[%s2 + $0x48] sm:$0xff]
        %v439 = vld [vmem:[%s2 + $0x50] sm:$0xff]
        %v440 = vld [vmem:[%s2 + $0x58] sm:$0xff]
        %v441 = vld [vmem:[%s2 + $0x60] sm:$0xff]
        %v442 = vld [vmem:[%s2 + $0x68] sm:$0xff]
        %v443 = vld [vmem:[%s2 + $0x70] sm:$0xff]
        %v444 = vld [vmem:[%s2 + $0x78] sm:$0xff]
        %v445 = vld [vmem:[%s3] sm:$0xf]
        %446 = vmatprep.subr.mxu0 0.0
        %447 = vmatpush1.msra.mxu0 %v429
        %448 = vmatprep.subr.mxu0 0.0
        %449 = vmatpush1.msra.mxu0 %v430
        %450 = vmatprep.subr.mxu0 0.0
        %451 = vmatpush1.msra.mxu0 %v431
        %452 = vmatprep.subr.mxu0 0.0
        %453 = vmatpush1.msra.mxu0 %v432
        %454 = vmatprep.subr.mxu0 0.0
        %455 = vmatpush1.msra.mxu0 %v433
        %456 = vmatprep.subr.mxu0 0.0
        %457 = vmatpush1.msra.mxu0 %v434
        %458 = vmatprep.subr.mxu0 0.0
        %459 = vmatpush1.msra.mxu0 %v435
        %460 = vmatprep.subr.mxu0 0.0
        %461 = vmatpush1.msra.mxu0 %v436
        %462 = vmatprep.subr.mxu0 0.0
        %463 = vmatpush1.msra.mxu0 %v437
        %464 = vmatprep.subr.mxu0 0.0
        %465 = vmatpush1.msra.mxu0 %v438
        %466 = vmatprep.subr.mxu0 0.0
        %467 = vmatpush1.msra.mxu0 %v439
        %468 = vmatprep.subr.mxu0 0.0
        %469 = vmatpush1.msra.mxu0 %v440
        %470 = vmatprep.subr.mxu0 0.0
        %471 = vmatpush1.msra.mxu0 %v441
        %472 = vmatprep.subr.mxu0 0.0
        %473 = vmatpush1.msra.mxu0 %v442
        %474 = vmatprep.subr.mxu0 0.0
        %475 = vmatpush1.msra.mxu0 %v443
        %476 = vmatprep.subr.mxu0 0.0
        %477 = vmatpush1.msra.mxu0 %v444
        %478 = vmatprep.subr.mxu0 0.0
        %479 = vmatpush1.msra.mxu0 0.0
        %480 = vmatprep.subr.mxu0 0.0
        %481 = vmatpush1.msra.mxu0 0.0
        %482 = vmatprep.subr.mxu0 0.0
        %483 = vmatpush1.msra.mxu0 0.0
        %484 = vmatprep.subr.mxu0 0.0
        %485 = vmatpush1.msra.mxu0 0.0
        %486 = vmatprep.subr.mxu0 0.0
        %487 = vmatpush1.msra.mxu0 0.0
        %488 = vmatprep.subr.mxu0 0.0
        %489 = vmatpush1.msra.mxu0 0.0
        %490 = vmatprep.subr.mxu0 0.0
        %491 = vmatpush1.msra.mxu0 0.0
        %492 = vmatprep.subr.mxu0 0.0
        %493 = vmatpush1.msra.mxu0 0.0
        %494 = vmatprep.subr.mxu0 0.0
        %495 = vmatpush1.msra.mxu0 0.0
        %496 = vmatprep.subr.mxu0 0.0
        %497 = vmatpush1.msra.mxu0 0.0
        %498 = vmatprep.subr.mxu0 0.0
        %499 = vmatpush1.msra.mxu0 0.0
        %500 = vmatprep.subr.mxu0 0.0
        %501 = vmatpush1.msra.mxu0 0.0
        %502 = vmatprep.subr.mxu0 0.0
        %503 = vmatpush1.msra.mxu0 0.0
        %504 = vmatprep.subr.mxu0 0.0
        %505 = vmatpush1.msra.mxu0 0.0
        %506 = vmatprep.subr.mxu0 0.0
        %507 = vmatpush1.msra.mxu0 0.0
        %508 = vmatprep.subr.mxu0 0.0
        %509 = vmatpush1.msra.mxu0 0.0
        %510 = vmatprep.mubr.f32.mxu0 0.0
        %511 = vmatmul.mubr.f32.gmra.mrb[0].mxu0 %v391
        %v512 = vpop.f32.mrb[0].mxu0
        %v513 = vadd.f32 0.0, %v512
        %v514 = vpop.f32.mrb[0].mxu0
        %515 = vmatprep.mubr.f32.mxu0 0.0
        %516 = vmatmul.mubr.f32.gmra.mrb[0].mxu0 %v396
        %v517 = vpop.f32.mrb[0].mxu0
        %v518 = vadd.f32 0.0, %v517
        %v519 = vpop.f32.mrb[0].mxu0
        %520 = vmatprep.mubr.f32.mxu0 0.0
        %521 = vmatmul.mubr.f32.gmra.mrb[0].mxu0 %v401
        %v522 = vpop.f32.mrb[0].mxu0
        %v523 = vadd.f32 0.0, %v522
        %v524 = vpop.f32.mrb[0].mxu0
        %525 = vmatprep.mubr.f32.mxu0 0.0
        %526 = vmatmul.mubr.f32.gmra.mrb[0].mxu0 %v406
        %v527 = vpop.f32.mrb[0].mxu0
        %v528 = vadd.f32 0.0, %v527
        %v529 = vpop.f32.mrb[0].mxu0
        %530 = vmatprep.mubr.f32.mxu0 0.0
        %531 = vmatmul.mubr.f32.gmra.mrb[0].mxu0 %v411
        %v532 = vpop.f32.mrb[0].mxu0
        %v533 = vadd.f32 0.0, %v532
        %v534 = vpop.f32.mrb[0].mxu0
        %535 = vmatprep.mubr.f32.mxu0 0.0
        %536 = vmatmul.mubr.f32.gmra.mrb[0].mxu0 %v416
        %v537 = vpop.f32.mrb[0].mxu0
        %v538 = vadd.f32 0.0, %v537
        %v539 = vpop.f32.mrb[0].mxu0
        %540 = vmatprep.mubr.f32.mxu0 0.0
        %541 = vmatmul.mubr.f32.gmra.mrb[0].mxu0 %v421
        %v542 = vpop.f32.mrb[0].mxu0
        %v543 = vadd.f32 0.0, %v542
        %v544 = vpop.f32.mrb[0].mxu0
        %545 = vmatprep.mubr.f32.mxu0 0.0
        %546 = vmatmul.mubr.f32.gmra.mrb[0].mxu0 %v426
        %v547 = vpop.f32.mrb[0].mxu0
        %v548 = vadd.f32 0.0, %v547
        %v549 = vpop.f32.mrb[0].mxu0
        %550 = vdwg.mxu0
        %vm551 = vcmask 31744
        %v553 = vsel %vm551, %v513, 0
        %v556 = vsel %vm551, %v518, 0
        %v559 = vsel %vm551, %v523, 0
        %v562 = vsel %vm551, %v528, 0
        %v565 = vsel %vm551, %v533, 0
        %v568 = vsel %vm551, %v538, 0
        %v571 = vsel %vm551, %v543, 0
        %v574 = vsel %vm551, %v548, 0
        %vm576 = vcmask 1043456
        %v578 = vsel %vm576, %v445, 0
        %580 = vmatprep.subr.mxu0 0.0
        %581 = vmatpush1.msra.mxu0 %v578
        %582 = vmatprep.subr.mxu0 0.0
        %583 = vmatpush1.msra.mxu0 0.0
        %584 = vmatprep.subr.mxu0 0.0
        %585 = vmatpush1.msra.mxu0 0.0
        %586 = vmatprep.subr.mxu0 0.0
        %587 = vmatpush1.msra.mxu0 0.0
        %588 = vmatprep.subr.mxu0 0.0
        %589 = vmatpush1.msra.mxu0 0.0
        %590 = vmatprep.subr.mxu0 0.0
        %591 = vmatpush1.msra.mxu0 0.0
        %592 = vmatprep.subr.mxu0 0.0
        %593 = vmatpush1.msra.mxu0 0.0
        %594 = vmatprep.subr.mxu0 0.0
        %595 = vmatpush1.msra.mxu0 0.0
        %596 = vmatprep.subr.mxu0 0.0
        %597 = vmatpush1.msra.mxu0 0.0
        %598 = vmatprep.subr.mxu0 0.0
        %599 = vmatpush1.msra.mxu0 0.0
        %600 = vmatprep.subr.mxu0 0.0
        %601 = vmatpush1.msra.mxu0 0.0
        %602 = vmatprep.subr.mxu0 0.0
        %603 = vmatpush1.msra.mxu0 0.0
        %604 = vmatprep.subr.mxu0 0.0
        %605 = vmatpush1.msra.mxu0 0.0
        %606 = vmatprep.subr.mxu0 0.0
        %607 = vmatpush1.msra.mxu0 0.0
        %608 = vmatprep.subr.mxu0 0.0
        %609 = vmatpush1.msra.mxu0 0.0
        %610 = vmatprep.subr.mxu0 0.0
        %611 = vmatpush1.msra.mxu0 0.0
        %612 = vmatprep.subr.mxu0 0.0
        %613 = vmatpush1.msra.mxu0 0.0
        %614 = vmatprep.subr.mxu0 0.0
        %615 = vmatpush1.msra.mxu0 0.0
        %616 = vmatprep.subr.mxu0 0.0
        %617 = vmatpush1.msra.mxu0 0.0
        %618 = vmatprep.subr.mxu0 0.0
        %619 = vmatpush1.msra.mxu0 0.0
        %620 = vmatprep.subr.mxu0 0.0
        %621 = vmatpush1.msra.mxu0 0.0
        %622 = vmatprep.subr.mxu0 0.0
        %623 = vmatpush1.msra.mxu0 0.0
        %624 = vmatprep.subr.mxu0 0.0
        %625 = vmatpush1.msra.mxu0 0.0
        %626 = vmatprep.subr.mxu0 0.0
        %627 = vmatpush1.msra.mxu0 0.0
        %628 = vmatprep.subr.mxu0 0.0
        %629 = vmatpush1.msra.mxu0 0.0
        %630 = vmatprep.subr.mxu0 0.0
        %631 = vmatpush1.msra.mxu0 0.0
        %632 = vmatprep.subr.mxu0 0.0
        %633 = vmatpush1.msra.mxu0 0.0
        %634 = vmatprep.subr.mxu0 0.0
        %635 = vmatpush1.msra.mxu0 0.0
        %636 = vmatprep.subr.mxu0 0.0
        %637 = vmatpush1.msra.mxu0 0.0
        %638 = vmatprep.subr.mxu0 0.0
        %639 = vmatpush1.msra.mxu0 0.0
        %640 = vmatprep.subr.mxu0 0.0
        %641 = vmatpush1.msra.mxu0 0.0
        %642 = vmatprep.subr.mxu0 0.0
        %643 = vmatpush1.msra.mxu0 0.0
        %644 = vmatprep.mubr.f32.mxu0 0.0
        %645 = vmatmul.mubr.f32.gmra.mrb[0].mxu0 %v553
        %v646 = vpop.f32.mrb[0].mxu0
        %v647 = vadd.f32 0.0, %v646
        %v648 = vpop.f32.mrb[0].mxu0
        %649 = vmatprep.mubr.f32.mxu0 0.0
        %650 = vmatmul.mubr.f32.gmra.mrb[0].mxu0 %v556
        %v651 = vpop.f32.mrb[0].mxu0
        %v652 = vadd.f32 0.0, %v651
        %v653 = vpop.f32.mrb[0].mxu0
        %654 = vmatprep.mubr.f32.mxu0 0.0
        %655 = vmatmul.mubr.f32.gmra.mrb[0].mxu0 %v559
        %v656 = vpop.f32.mrb[0].mxu0
        %v657 = vadd.f32 0.0, %v656
        %v658 = vpop.f32.mrb[0].mxu0
        %659 = vmatprep.mubr.f32.mxu0 0.0
        %660 = vmatmul.mubr.f32.gmra.mrb[0].mxu0 %v562
        %v661 = vpop.f32.mrb[0].mxu0
        %v662 = vadd.f32 0.0, %v661
        %v663 = vpop.f32.mrb[0].mxu0
        %664 = vmatprep.mubr.f32.mxu0 0.0
        %665 = vmatmul.mubr.f32.gmra.mrb[0].mxu0 %v565
        %v666 = vpop.f32.mrb[0].mxu0
        %v667 = vadd.f32 0.0, %v666
        %v668 = vpop.f32.mrb[0].mxu0
        %669 = vmatprep.mubr.f32.mxu0 0.0
        %670 = vmatmul.mubr.f32.gmra.mrb[0].mxu0 %v568
        %v671 = vpop.f32.mrb[0].mxu0
        %v672 = vadd.f32 0.0, %v671
        %v673 = vpop.f32.mrb[0].mxu0
        %674 = vmatprep.mubr.f32.mxu0 0.0
        %675 = vmatmul.mubr.f32.gmra.mrb[0].mxu0 %v571
        %v676 = vpop.f32.mrb[0].mxu0
        %v677 = vadd.f32 0.0, %v676
        %v678 = vpop.f32.mrb[0].mxu0
        %679 = vmatprep.mubr.f32.mxu0 0.0
        %680 = vmatmul.mubr.f32.gmra.mrb[0].mxu0 %v574
        %v681 = vpop.f32.mrb[0].mxu0
        %v682 = vadd.f32 0.0, %v681
        %v683 = vpop.f32.mrb[0].mxu0
        %684 = vdwg.mxu0
        %v685 = vsub.f32 %v391, %v647
        %v686 = vsub.f32 %v396, %v652
        %v687 = vsub.f32 %v401, %v657
        %v688 = vsub.f32 %v406, %v662
        %v689 = vsub.f32 %v411, %v667
        %v690 = vsub.f32 %v416, %v672
        %v691 = vsub.f32 %v421, %v677
        %v692 = vsub.f32 %v426, %v682
        %v693 = vmul.f32 %v685, %v685
        %v694 = vmul.f32 %v686, %v686
        %v695 = vmul.f32 %v687, %v687
        %v696 = vmul.f32 %v688, %v688
        %v697 = vmul.f32 %v689, %v689
        %v698 = vmul.f32 %v690, %v690
        %v699 = vmul.f32 %v691, %v691
        %v700 = vmul.f32 %v692, %v692
        %701 = vmatprep.subr.mxu0 0.0
        %702 = vmatpush1.msra.mxu0 %v429
        %703 = vmatprep.subr.mxu0 0.0
        %704 = vmatpush1.msra.mxu0 %v430
        %705 = vmatprep.subr.mxu0 0.0
        %706 = vmatpush1.msra.mxu0 %v431
        %707 = vmatprep.subr.mxu0 0.0
        %708 = vmatpush1.msra.mxu0 %v432
        %709 = vmatprep.subr.mxu0 0.0
        %710 = vmatpush1.msra.mxu0 %v433
        %711 = vmatprep.subr.mxu0 0.0
        %712 = vmatpush1.msra.mxu0 %v434
        %713 = vmatprep.subr.mxu0 0.0
        %714 = vmatpush1.msra.mxu0 %v435
        %715 = vmatprep.subr.mxu0 0.0
        %716 = vmatpush1.msra.mxu0 %v436
        %717 = vmatprep.subr.mxu0 0.0
        %718 = vmatpush1.msra.mxu0 %v437
        %719 = vmatprep.subr.mxu0 0.0
        %720 = vmatpush1.msra.mxu0 %v438
        %721 = vmatprep.subr.mxu0 0.0
        %722 = vmatpush1.msra.mxu0 %v439
        %723 = vmatprep.subr.mxu0 0.0
        %724 = vmatpush1.msra.mxu0 %v440
        %725 = vmatprep.subr.mxu0 0.0
        %726 = vmatpush1.msra.mxu0 %v441
        %727 = vmatprep.subr.mxu0 0.0
        %728 = vmatpush1.msra.mxu0 %v442
        %729 = vmatprep.subr.mxu0 0.0
        %730 = vmatpush1.msra.mxu0 %v443
        %731 = vmatprep.subr.mxu0 0.0
        %732 = vmatpush1.msra.mxu0 %v444
        %733 = vmatprep.subr.mxu0 0.0
        %734 = vmatpush1.msra.mxu0 0.0
        %735 = vmatprep.subr.mxu0 0.0
        %736 = vmatpush1.msra.mxu0 0.0
        %737 = vmatprep.subr.mxu0 0.0
        %738 = vmatpush1.msra.mxu0 0.0
        %739 = vmatprep.subr.mxu0 0.0
        %740 = vmatpush1.msra.mxu0 0.0
        %741 = vmatprep.subr.mxu0 0.0
        %742 = vmatpush1.msra.mxu0 0.0
        %743 = vmatprep.subr.mxu0 0.0
        %744 = vmatpush1.msra.mxu0 0.0
        %745 = vmatprep.subr.mxu0 0.0
        %746 = vmatpush1.msra.mxu0 0.0
        %747 = vmatprep.subr.mxu0 0.0
        %748 = vmatpush1.msra.mxu0 0.0
        %749 = vmatprep.subr.mxu0 0.0
        %750 = vmatpush1.msra.mxu0 0.0
        %751 = vmatprep.subr.mxu0 0.0
        %752 = vmatpush1.msra.mxu0 0.0
        %753 = vmatprep.subr.mxu0 0.0
        %754 = vmatpush1.msra.mxu0 0.0
        %755 = vmatprep.subr.mxu0 0.0
        %756 = vmatpush1.msra.mxu0 0.0
        %757 = vmatprep.subr.mxu0 0.0
        %758 = vmatpush1.msra.mxu0 0.0
        %759 = vmatprep.subr.mxu0 0.0
        %760 = vmatpush1.msra.mxu0 0.0
        %761 = vmatprep.subr.mxu0 0.0
        %762 = vmatpush1.msra.mxu0 0.0
        %763 = vmatprep.subr.mxu0 0.0
        %764 = vmatpush1.msra.mxu0 0.0
        %765 = vmatprep.mubr.f32.mxu0 0.0
        %766 = vmatmul.mubr.f32.gmra.mrb[0].mxu0 %v693
        %v767 = vpop.f32.mrb[0].mxu0
        %v768 = vadd.f32 0.0, %v767
        %v769 = vpop.f32.mrb[0].mxu0
        %770 = vmatprep.mubr.f32.mxu0 0.0
        %771 = vmatmul.mubr.f32.gmra.mrb[0].mxu0 %v694
        %v772 = vpop.f32.mrb[0].mxu0
        %v773 = vadd.f32 0.0, %v772
        %v774 = vpop.f32.mrb[0].mxu0
        %775 = vmatprep.mubr.f32.mxu0 0.0
        %776 = vmatmul.mubr.f32.gmra.mrb[0].mxu0 %v695
        %v777 = vpop.f32.mrb[0].mxu0
        %v778 = vadd.f32 0.0, %v777
        %v779 = vpop.f32.mrb[0].mxu0
        %780 = vmatprep.mubr.f32.mxu0 0.0
        %781 = vmatmul.mubr.f32.gmra.mrb[0].mxu0 %v696
        %v782 = vpop.f32.mrb[0].mxu0
        %v783 = vadd.f32 0.0, %v782
        %v784 = vpop.f32.mrb[0].mxu0
        %785 = vmatprep.mubr.f32.mxu0 0.0
        %786 = vmatmul.mubr.f32.gmra.mrb[0].mxu0 %v697
        %v787 = vpop.f32.mrb[0].mxu0
        %v788 = vadd.f32 0.0, %v787
        %v789 = vpop.f32.mrb[0].mxu0
        %790 = vmatprep.mubr.f32.mxu0 0.0
        %791 = vmatmul.mubr.f32.gmra.mrb[0].mxu0 %v698
        %v792 = vpop.f32.mrb[0].mxu0
        %v793 = vadd.f32 0.0, %v792
        %v794 = vpop.f32.mrb[0].mxu0
        %795 = vmatprep.mubr.f32.mxu0 0.0
        %796 = vmatmul.mubr.f32.gmra.mrb[0].mxu0 %v699
        %v797 = vpop.f32.mrb[0].mxu0
        %v798 = vadd.f32 0.0, %v797
        %v799 = vpop.f32.mrb[0].mxu0
        %800 = vmatprep.mubr.f32.mxu0 0.0
        %801 = vmatmul.mubr.f32.gmra.mrb[0].mxu0 %v700
        %v802 = vpop.f32.mrb[0].mxu0
        %v803 = vadd.f32 0.0, %v802
        %v804 = vpop.f32.mrb[0].mxu0
        %805 = vdwg.mxu0
        %v807 = vsel %vm551, %v768, 0
        %v810 = vsel %vm551, %v773, 0
        %v813 = vsel %vm551, %v778, 0
        %v816 = vsel %vm551, %v783, 0
        %v819 = vsel %vm551, %v788, 0
        %v822 = vsel %vm551, %v793, 0
        %v825 = vsel %vm551, %v798, 0
        %v828 = vsel %vm551, %v803, 0
        %830 = vmatprep.subr.mxu0 0.0
        %831 = vmatpush1.msra.mxu0 %v578
        %832 = vmatprep.subr.mxu0 0.0
        %833 = vmatpush1.msra.mxu0 0.0
        %834 = vmatprep.subr.mxu0 0.0
        %835 = vmatpush1.msra.mxu0 0.0
        %836 = vmatprep.subr.mxu0 0.0
        %837 = vmatpush1.msra.mxu0 0.0
        %838 = vmatprep.subr.mxu0 0.0
        %839 = vmatpush1.msra.mxu0 0.0
        %840 = vmatprep.subr.mxu0 0.0
        %841 = vmatpush1.msra.mxu0 0.0
        %842 = vmatprep.subr.mxu0 0.0
        %843 = vmatpush1.msra.mxu0 0.0
        %844 = vmatprep.subr.mxu0 0.0
        %845 = vmatpush1.msra.mxu0 0.0
        %846 = vmatprep.subr.mxu0 0.0
        %847 = vmatpush1.msra.mxu0 0.0
        %848 = vmatprep.subr.mxu0 0.0
        %849 = vmatpush1.msra.mxu0 0.0
        %850 = vmatprep.subr.mxu0 0.0
        %851 = vmatpush1.msra.mxu0 0.0
        %852 = vmatprep.subr.mxu0 0.0
        %853 = vmatpush1.msra.mxu0 0.0
        %854 = vmatprep.subr.mxu0 0.0
        %855 = vmatpush1.msra.mxu0 0.0
        %856 = vmatprep.subr.mxu0 0.0
        %857 = vmatpush1.msra.mxu0 0.0
        %858 = vmatprep.subr.mxu0 0.0
        %859 = vmatpush1.msra.mxu0 0.0
        %860 = vmatprep.subr.mxu0 0.0
        %861 = vmatpush1.msra.mxu0 0.0
        %862 = vmatprep.subr.mxu0 0.0
        %863 = vmatpush1.msra.mxu0 0.0
        %864 = vmatprep.subr.mxu0 0.0
        %865 = vmatpush1.msra.mxu0 0.0
        %866 = vmatprep.subr.mxu0 0.0
        %867 = vmatpush1.msra.mxu0 0.0
        %868 = vmatprep.subr.mxu0 0.0
        %869 = vmatpush1.msra.mxu0 0.0
        %870 = vmatprep.subr.mxu0 0.0
        %871 = vmatpush1.msra.mxu0 0.0
        %872 = vmatprep.subr.mxu0 0.0
        %873 = vmatpush1.msra.mxu0 0.0
        %874 = vmatprep.subr.mxu0 0.0
        %875 = vmatpush1.msra.mxu0 0.0
        %876 = vmatprep.subr.mxu0 0.0
        %877 = vmatpush1.msra.mxu0 0.0
        %878 = vmatprep.subr.mxu0 0.0
        %879 = vmatpush1.msra.mxu0 0.0
        %880 = vmatprep.subr.mxu0 0.0
        %881 = vmatpush1.msra.mxu0 0.0
        %882 = vmatprep.subr.mxu0 0.0
        %883 = vmatpush1.msra.mxu0 0.0
        %884 = vmatprep.subr.mxu0 0.0
        %885 = vmatpush1.msra.mxu0 0.0
        %886 = vmatprep.subr.mxu0 0.0
        %887 = vmatpush1.msra.mxu0 0.0
        %888 = vmatprep.subr.mxu0 0.0
        %889 = vmatpush1.msra.mxu0 0.0
        %890 = vmatprep.subr.mxu0 0.0
        %891 = vmatpush1.msra.mxu0 0.0
        %892 = vmatprep.subr.mxu0 0.0
        %893 = vmatpush1.msra.mxu0 0.0
        %894 = vmatprep.mubr.f32.mxu0 0.0
        %895 = vmatmul.mubr.f32.gmra.mrb[0].mxu0 %v807
        %v896 = vpop.f32.mrb[0].mxu0
        %v897 = vadd.f32 1e-05, %v896
        %v898 = vpop.f32.mrb[0].mxu0
        %899 = vmatprep.mubr.f32.mxu0 0.0
        %900 = vmatmul.mubr.f32.gmra.mrb[0].mxu0 %v810
        %v901 = vpop.f32.mrb[0].mxu0
        %v902 = vadd.f32 1e-05, %v901
        %v903 = vpop.f32.mrb[0].mxu0
        %904 = vmatprep.mubr.f32.mxu0 0.0
        %905 = vmatmul.mubr.f32.gmra.mrb[0].mxu0 %v813
        %v906 = vpop.f32.mrb[0].mxu0
        %v907 = vadd.f32 1e-05, %v906
        %v908 = vpop.f32.mrb[0].mxu0
        %909 = vmatprep.mubr.f32.mxu0 0.0
        %910 = vmatmul.mubr.f32.gmra.mrb[0].mxu0 %v816
        %v911 = vpop.f32.mrb[0].mxu0
        %v912 = vadd.f32 1e-05, %v911
        %v913 = vpop.f32.mrb[0].mxu0
        %914 = vmatprep.mubr.f32.mxu0 0.0
        %915 = vmatmul.mubr.f32.gmra.mrb[0].mxu0 %v819
        %v916 = vpop.f32.mrb[0].mxu0
        %v917 = vadd.f32 1e-05, %v916
        %v918 = vpop.f32.mrb[0].mxu0
        %919 = vmatprep.mubr.f32.mxu0 0.0
        %920 = vmatmul.mubr.f32.gmra.mrb[0].mxu0 %v822
        %v921 = vpop.f32.mrb[0].mxu0
        %v922 = vadd.f32 1e-05, %v921
        %v923 = vpop.f32.mrb[0].mxu0
        %924 = vmatprep.mubr.f32.mxu0 0.0
        %925 = vmatmul.mubr.f32.gmra.mrb[0].mxu0 %v825
        %v926 = vpop.f32.mrb[0].mxu0
        %v927 = vadd.f32 1e-05, %v926
        %v928 = vpop.f32.mrb[0].mxu0
        %929 = vmatprep.mubr.f32.mxu0 0.0
        %930 = vmatmul.mubr.f32.gmra.mrb[0].mxu0 %v828
        %v931 = vpop.f32.mrb[0].mxu0
        %v932 = vadd.f32 1e-05, %v931
        %v933 = vpop.f32.mrb[0].mxu0
        %934 = vdwg.mxu0
        %v935 = vrsqrt.pop %v897
        %v936 = vrsqrt.pop %v902
        %v937 = vrsqrt.pop %v907
        %v938 = vrsqrt.pop %v912
        %v939 = vrsqrt.pop %v917
        %v940 = vrsqrt.pop %v922
        %v941 = vrsqrt.pop %v927
        %v942 = vrsqrt.pop %v932
        %v943 = vmul.f32 %v685, %v935
        %v944 = vmul.f32 %v686, %v936
        %v945 = vmul.f32 %v687, %v937
        %v946 = vmul.f32 %v688, %v938
        %v947 = vmul.f32 %v689, %v939
        %v948 = vmul.f32 %v690, %v940
        %v949 = vmul.f32 %v691, %v941
        %v950 = vmul.f32 %v692, %v942
        %v951 = vld [vmem:[%s4] sm:$0x1]
        %v953 = vlaneseq
        %v954 = vshrl.u32 %v953, 7
        %v955 = vsub.s32 0, %v954
        %v956 = vrot.slane %v951, %v955
        %v958 = vmul.f32 %v943, %v956
        %v959 = vmul.f32 %v944, %v956
        %v960 = vmul.f32 %v945, %v956
        %v961 = vmul.f32 %v946, %v956
        %v962 = vmul.f32 %v947, %v956
        %v963 = vmul.f32 %v948, %v956
        %v964 = vmul.f32 %v949, %v956
        %v965 = vmul.f32 %v950, %v956
        %v966 = vld [vmem:[%s5] sm:$0x1]
        %v968 = vlaneseq
        %v969 = vshrl.u32 %v968, 7
        %v970 = vsub.s32 0, %v969
        %v971 = vrot.slane %v966, %v970
        %v973 = vadd.f32 %v958, %v971
        %v974 = vadd.f32 %v959, %v971
        %v975 = vadd.f32 %v960, %v971
        %v976 = vadd.f32 %v961, %v971
        %v977 = vadd.f32 %v962, %v971
        %v978 = vadd.f32 %v963, %v971
        %v979 = vadd.f32 %v964, %v971
        %v980 = vadd.f32 %v965, %v971
        %981 = vst [vmem:[%s274] sm:$0xff] %v973
        %982 = vst [vmem:[%s274 + $0x8] sm:$0xff] %v974
        %983 = vst [vmem:[%s274 + $0x10] sm:$0xff] %v975
        %984 = vst [vmem:[%s274 + $0x18] sm:$0xff] %v976
        %985 = vst [vmem:[%s274 + $0x20] sm:$0xff] %v977
        %986 = vst [vmem:[%s274 + $0x28] sm:$0xff] %v978
        %987 = vst [vmem:[%s274 + $0x30] sm:$0xff] %v979
        %988 = vst [vmem:[%s274 + $0x38] sm:$0xff] %v980
        %s989 = sand.u32 %s178, 1
        %s990 = scalar_lea.sflag [#allocation3], %s989
        %s991 = sand.u32 %s178, 1
        %s992 = smul.addr %s991, 64
        %s993 = scalar_lea.vmem [#allocation2], %s992
        // Predicated region
        $region45: #{tpu_custom_call.1} parent=43 // pred_check
          %p994 = pneg %p188
        $region46: #{tpu_custom_call.1} parent=43 // pred_check_branch
          %996 = sbr.rel (%p994) target = $region48
        $region47: #{tpu_custom_call.1} parent=43 // pred_region
          %s997 = smul.u32 8, %s24
          %s999 = ssub.s32 1024, 1024
          %1000 = vsyncadd %s990, %s999
          %s1001 = smul.addr %s997, 4
          %s1002 = sadd.s32 %s25, %s1001
          %s1003 = smul.addr %s1002, 128
          %s1004 = scalar_lea.hbm %s6, %s1003
          %s1005 = sshll.u32 %s993, 4
          %s1006 = int_to_ptr.vmem [resolvable:$true] %s1005
          %1011 = dma.vmem_to_hbm [thread:$0]  %s1006, 1024, %s1004, %s990, 128, 512, 8
        $region48: #{tpu_custom_call.1} parent=43 // pred_fallthru
          _
      $region44: #{tpu_custom_call.1} parent=5 // pred_fallthru
        _
      %p1012 = scmp.le.s32.totalorder 2, %s15
      // Predicated region
      $region49: #{tpu_custom_call.1} parent=5 // pred_check
        %p1013 = pneg %p1012
      $region50: #{tpu_custom_call.1} parent=5 // pred_check_branch
        %1015 = sbr.rel (%p1013) target = $region52
      $region51: #{tpu_custom_call.1} parent=5 // pred_region
        %s1016 = ssub.s32 %s15, 2
        // Predicated region
        $region53: #{tpu_custom_call.1} parent=51 // pred_check
          %p1017 = pneg %p194
        $region54: #{tpu_custom_call.1} parent=51 // pred_check_branch
          %1019 = sbr.rel (%p1017) target = $region56
        $region55: #{tpu_custom_call.1} parent=51 // pred_region
          %s1020 = sand.u32 %s179, 1
          %s1021 = scalar_lea.sflag [#allocation3], %s1020
          %s1022 = sand.u32 %s179, 1
          %s1023 = smul.addr %s1022, 64
          %s1024 = scalar_lea.vmem [#allocation2], %s1023
          %1025 = dma.done %s1021, 1024
        $region56: #{tpu_custom_call.1} parent=51 // pred_fallthru
          _
      $region52: #{tpu_custom_call.1} parent=5 // pred_fallthru
        _
    $region6: #{tpu_custom_call.1} parent=1 // loop_footer
      %s19 = sadd.s32 1, %s15
    $region7: #{tpu_custom_call.1} parent=1 // loop_footer_branch
      %14 = sbr.rel target = $region3
    $region8: #{tpu_custom_call.1} parent=1 // loop_exit
      _
    %1026 = vsyncpa [#allocation3], 1
    %s1027 = scalar_lea.sflag [#allocation3], 1
    %1028 = vsyncpa %s1027, 1

</llo_original>
